<compile_context>
chip_gen: v5e
topology: v5e:2x2
jax: 0.10.0
libtpu: 0.0.40
codegen_flags: <defaults>
</compile_context>

<pallas_src>
import jax
import jax.numpy as jnp
from jax import lax
from jax.experimental import pallas as pl
from jax.experimental.pallas import tpu as pltpu

IN_F = 768         # input features (fixed by the module: nn.Linear(768, 100))
HID = 100          # hidden features (real)
HID_PAD = 128      # hidden padded to one lane tile
TB_MAX_BF16 = 4096 # bf16 x tile: 6 MiB per buffer (double-buffered -> 12 MiB)
TB_MAX_F32 = 2048  # f32  x tile: 6 MiB per buffer (double-buffered -> 12 MiB)
VMEM_LIMIT = 32 * 1024 * 1024


def discriminator_kernel(x_ref, w1_ref, b1_ref, w2t_ref, b2_ref, o_ref):
    # GradReverse.forward is identity (gradient negation is backward-only).
    # Cast to bf16 in VMEM; MXU accumulates in f32 via preferred_element_type.
    x = x_ref[...].astype(jnp.bfloat16)                               # (TB, 768)

    # Linear(768, 100) + ReLU.  Hidden is padded to 128 lanes: padded columns
    # carry zero weight/bias, so relu(0) = 0 and they contribute nothing below.
    h = jnp.dot(x, w1_ref[...], preferred_element_type=jnp.float32) + b1_ref[...]
    h = jnp.maximum(h, 0.0)                                           # (TB, 128) f32
    # TODO(synk): Dropout(0.5) is identity (inference mode); training-mode parity
    # would need pltpu.prng_seed / prng_random_bits dropout masks.

    # Linear(100, 1) + ReLU, contracted on the lane axis of h (no materialized
    # h.T): the single output feature lands lane-dense as a (1, TB) row.
    # w2t row 0 holds the real weights; rows 1..7 are zero sublane padding.
    yt = lax.dot_general(w2t_ref[...], h, (((1,), (1,)), ((), ())),
                         preferred_element_type=jnp.float32)          # (8, TB)
    y = yt[0:1, :] + b2_ref[0, 0]                                     # (1, TB)
    y = jnp.maximum(y, 0.0)
    # Dropout(0.5): identity at inference.

    # Sigmoid: exp on EUP + approx reciprocal on EUP.
    o_ref[...] = pl.reciprocal(1.0 + jnp.exp(-y), approx=True)[None]  # (1, 1, TB)


def prepare_params(w1, b1, w2, b2):
    """Pad / lay out the Linear parameters once (hoisted out of the per-call path)."""
    w1p = jnp.zeros((IN_F, HID_PAD), jnp.bfloat16).at[:, :HID].set(w1.astype(jnp.bfloat16))
    b1p = jnp.zeros((1, HID_PAD), jnp.float32).at[0, :HID].set(b1.astype(jnp.float32))
    # Second layer stored transposed (row 0 = w2[:, 0]); rows 1..7 zero for an (8,128) block.
    w2t = jnp.zeros((8, HID_PAD), jnp.float32).at[0, :HID].set(w2[:, 0].astype(jnp.float32))
    b2p = jnp.asarray(b2, jnp.float32).reshape(1, 1)
    return w1p, b1p, w2t, b2p


def _round_up(v, m):
    return ((v + m - 1) // m) * m


def _pick_tile(n, tb_max):
    """Row tile: sublane-aligned, big enough to hide per-step overhead, and split
    into >= 2 tiles for mid-size batches so both v7x TensorCores get work."""
    if n <= 1024:
        return min(_round_up(n, 8), tb_max)          # single small tile
    return min(tb_max, _round_up(-(-n // 2), 128))   # >= 2 tiles, 128-row aligned


def discriminator_forward(x, params):
    """x: (..., 768) float.  Returns sigmoid(relu(relu(x@W1+b1)@W2+b2)).reshape(-1)."""
    w1p, b1p, w2t, b2p = params

    # No host-side pad or dtype cast: the kernel reads x as-is (cast happens in VMEM).
    x2 = x.reshape(-1, IN_F)
    n = x2.shape[0]

    tb_max = TB_MAX_BF16 if x2.dtype == jnp.bfloat16 else TB_MAX_F32
    tb = _pick_tile(n, tb_max)
    num_tiles = pl.cdiv(n, tb)   # last block may be partial; rows are independent,
                                 # so its garbage outputs are sliced off by [:n].

    out = pl.pallas_call(
        discriminator_kernel,
        out_shape=jax.ShapeDtypeStruct((num_tiles, 1, tb), jnp.float32),
        grid_spec=pltpu.PrefetchScalarGridSpec(
            num_scalar_prefetch=0,
            grid=(num_tiles,),
            in_specs=[
                pl.BlockSpec((tb, IN_F), lambda i: (i, 0)),           # x rows tile (as-is dtype)
                pl.BlockSpec((IN_F, HID_PAD), lambda i: (0, 0)),      # W1 (resident, bf16)
                pl.BlockSpec((1, HID_PAD), lambda i: (0, 0)),         # b1 (f32)
                pl.BlockSpec((8, HID_PAD), lambda i: (0, 0)),         # W2^T (row 0 real, f32)
                pl.BlockSpec(memory_space=pltpu.MemorySpace.SMEM),    # b2 scalar
            ],
            out_specs=pl.BlockSpec((1, 1, tb), lambda i: (i, 0, 0)),  # lane-dense output
        ),
        compiler_params=pltpu.CompilerParams(
            dimension_semantics=("parallel",),
            vmem_limit_bytes=VMEM_LIMIT),
    )(x2, w1p, b1p, w2t, b2p)

    # Lane-dense (num_tiles, 1, tb) -> flat rows; drop padded tail rows. Matches .view(-1).
    return out.reshape(-1)[:n]


def _reference(x, w1, b1, w2, b2):
    x2 = x.reshape(-1, IN_F)
    h = jnp.maximum(x2 @ w1 + b1, 0.0)
    y = jnp.maximum(h @ w2 + b2, 0.0)
    return jax.nn.sigmoid(y).reshape(-1)


if __name__ == "__main__":
    key = jax.random.PRNGKey(0)
    kx, k1, k2, k3, k4 = jax.random.split(key, 5)

    # Small example: (batch=2, seq=4, 768) -> flattens to 8 rows; .view(-1) -> (8,)
    batch, seq = 2, 4
    x = jax.random.normal(kx, (batch, seq, IN_F), dtype=jnp.float32)

    # Deterministic parameter init (uniform +-1/sqrt(fan_in), like nn.Linear default).
    lim1 = 1.0 / jnp.sqrt(jnp.float32(IN_F))
    lim2 = 1.0 / jnp.sqrt(jnp.float32(HID))
    w1 = jax.random.uniform(k1, (IN_F, HID), jnp.float32, -lim1, lim1)
    b1 = jax.random.uniform(k2, (HID,), jnp.float32, -lim1, lim1)
    w2 = jax.random.uniform(k3, (HID, 1), jnp.float32, -lim2, lim2)
    b2 = jax.random.uniform(k4, (1,), jnp.float32, -lim2, lim2)

    params = prepare_params(w1, b1, w2, b2)

    out = discriminator_forward(x, params)
    out = jax.block_until_ready(out)

    ref = _reference(x, w1, b1, w2, b2)
    assert out.shape == (batch * seq,), out.shape
    # bf16 activations/W1 + approx reciprocal: f32 accumulation keeps error ~1e-3.
    assert jnp.allclose(out, ref, atol=1e-2, rtol=1e-2), (out, ref)

    print("KERNEL_OK")
</pallas_src>

<mosaic_0001>
module attributes {stable_mosaic.version = 11 : i64} {
  func.func @discriminator_kernel(%arg0: i32, %arg1: memref<8x768xf32, #tpu.memory_space<vmem>>, %arg2: memref<768x128xbf16, #tpu.memory_space<vmem>>, %arg3: memref<1x128xf32, #tpu.memory_space<vmem>>, %arg4: memref<8x128xf32, #tpu.memory_space<vmem>>, %arg5: memref<1x1xf32, #tpu.memory_space<smem>>, %arg6: memref<1x1x8xf32, #tpu.memory_space<vmem>>) attributes {dimension_semantics = [#tpu.dimension_semantics<parallel>], iteration_bounds = array<i64: 1>, scalar_prefetch = 0 : i64, scratch_operands = 0 : i64, tpu.core_type = #tpu.core_type<tc>, window_params = [{transform_indices = @transform_0, window_bounds = array<i64: 8, 768>}, {pipeline_mode = #tpu.pipeline_mode<synchronous>, transform_indices = @transform_1, window_bounds = array<i64: 768, 128>}, {pipeline_mode = #tpu.pipeline_mode<synchronous>, transform_indices = @transform_2, window_bounds = array<i64: 1, 128>}, {pipeline_mode = #tpu.pipeline_mode<synchronous>, transform_indices = @transform_3, window_bounds = array<i64: 8, 128>}, {transform_indices = @transform_4, window_bounds = array<i64: 1, 1>}, {transform_indices = @transform_5, window_bounds = array<i64: 1, 1, 8>}]} {
    %c0 = arith.constant 0 : index
    %c0_0 = arith.constant 0 : index
    %0 = vector.load %arg1[%c0, %c0_0] : memref<8x768xf32, #tpu.memory_space<vmem>>, vector<8x768xf32>
    %1 = arith.truncf %0 : vector<8x768xf32> to vector<8x768xbf16>
    %c0_1 = arith.constant 0 : index
    %c0_2 = arith.constant 0 : index
    %2 = vector.load %arg2[%c0_1, %c0_2] : memref<768x128xbf16, #tpu.memory_space<vmem>>, vector<768x128xbf16>
    %cst = arith.constant dense<0.000000e+00> : vector<8x128xf32>
    %3 = tpu.matmul %1, %2, %cst {dimension_numbers = #tpu.dot_dimension_numbers<[1], [0], [0], [1], [0, 0, 1, 1], [], []>} : vector<8x768xbf16>, vector<768x128xbf16>, vector<8x128xf32> -> vector<8x128xf32>
    %c0_3 = arith.constant 0 : index
    %c0_4 = arith.constant 0 : index
    %4 = vector.load %arg3[%c0_3, %c0_4] : memref<1x128xf32, #tpu.memory_space<vmem>>, vector<1x128xf32>
    %5 = vector.broadcast %4 : vector<1x128xf32> to vector<8x128xf32>
    %6 = arith.addf %3, %5 : vector<8x128xf32>
    %cst_5 = arith.constant 0.000000e+00 : f32
    %7 = vector.broadcast %cst_5 : f32 to vector<8x128xf32>
    %8 = arith.maximumf %6, %7 : vector<8x128xf32>
    %c0_6 = arith.constant 0 : index
    %c0_7 = arith.constant 0 : index
    %9 = vector.load %arg4[%c0_6, %c0_7] : memref<8x128xf32, #tpu.memory_space<vmem>>, vector<8x128xf32>
    %cst_8 = arith.constant dense<0.000000e+00> : vector<8x8xf32>
    %10 = tpu.matmul %9, %8, %cst_8 {dimension_numbers = #tpu.dot_dimension_numbers<[1], [1], [0], [0], [0, 0, 1, 0], [], []>} : vector<8x128xf32>, vector<8x128xf32>, vector<8x8xf32> -> vector<8x8xf32>
    %11 = vector.extract_strided_slice %10 {offsets = [0, 0], sizes = [1, 8], strides = [1, 1]} : vector<8x8xf32> to vector<1x8xf32>
    %c0_9 = arith.constant 0 : index
    %c0_10 = arith.constant 0 : index
    %12 = memref.load %arg5[%c0_9, %c0_10] : memref<1x1xf32, #tpu.memory_space<smem>>
    %13 = vector.broadcast %12 : f32 to vector<1x8xf32>
    %14 = arith.addf %11, %13 : vector<1x8xf32>
    %cst_11 = arith.constant 0.000000e+00 : f32
    %15 = vector.broadcast %cst_11 : f32 to vector<1x8xf32>
    %16 = arith.maximumf %14, %15 : vector<1x8xf32>
    %cst_12 = arith.constant 0.000000e+00 : f32
    %17 = vector.broadcast %cst_12 : f32 to vector<1x8xf32>
    %18 = arith.subf %17, %16 : vector<1x8xf32>
    %19 = math.exp %18 : vector<1x8xf32>
    %cst_13 = arith.constant 1.000000e+00 : f32
    %20 = vector.broadcast %cst_13 : f32 to vector<1x8xf32>
    %21 = arith.addf %20, %19 : vector<1x8xf32>
    %22 = tpu.reciprocal %21 {approx = true} : vector<1x8xf32> -> vector<1x8xf32>
    %23 = vector.shape_cast %22 : vector<1x8xf32> to vector<1x1x8xf32>
    %c0_14 = arith.constant 0 : index
    %c0_15 = arith.constant 0 : index
    %c0_16 = arith.constant 0 : index
    %24 = vector.load %arg6[%c0_14, %c0_15, %c0_16] : memref<1x1x8xf32, #tpu.memory_space<vmem>>, vector<1x1x8xf32>
    tpu.vector_store %arg6[%c0_14, %c0_15, %c0_16], %23 {strides = array<i32>} : memref<1x1x8xf32, #tpu.memory_space<vmem>>, vector<1x1x8xf32>,
    return
  }
  func.func @transform_0(%arg0: i32) -> (i32, i32) {
    %c0_i32 = arith.constant 0 : i32
    %c0_i32_0 = arith.constant 0 : i32
    return %arg0, %c0_i32 : i32, i32
  }
  func.func @transform_1(%arg0: i32) -> (i32, i32) {
    %c0_i32 = arith.constant 0 : i32
    %c0_i32_0 = arith.constant 0 : i32
    %c0_i32_1 = arith.constant 0 : i32
    return %c0_i32, %c0_i32_0 : i32, i32
  }
  func.func @transform_2(%arg0: i32) -> (i32, i32) {
    %c0_i32 = arith.constant 0 : i32
    %c0_i32_0 = arith.constant 0 : i32
    %c0_i32_1 = arith.constant 0 : i32
    return %c0_i32, %c0_i32_0 : i32, i32
  }
  func.func @transform_3(%arg0: i32) -> (i32, i32) {
    %c0_i32 = arith.constant 0 : i32
    %c0_i32_0 = arith.constant 0 : i32
    %c0_i32_1 = arith.constant 0 : i32
    return %c0_i32, %c0_i32_0 : i32, i32
  }
  func.func @transform_4(%arg0: i32) -> (i32, i32) {
    %c0_i32 = arith.constant 0 : i32
    %c0_i32_0 = arith.constant 0 : i32
    %c0_i32_1 = arith.constant 0 : i32
    return %c0_i32, %c0_i32_0 : i32, i32
  }
  func.func @transform_5(%arg0: i32) -> (i32, i32, i32) {
    %c0_i32 = arith.constant 0 : i32
    %c0_i32_0 = arith.constant 0 : i32
    %c0_i32_1 = arith.constant 0 : i32
    return %arg0, %c0_i32, %c0_i32_0 : i32, i32, i32
  }
}

</mosaic_0001>

<llo_original>
// kernel: tpu_custom_call.1
$region0: #{tpu_custom_call.1}
  #allocation0 [shape = 'u32[]', space=smem, size = 0x4, offset = 0x4, fixed_abs, tag = 'smem constant byte address 0x4 - core index']
  #allocation1 [shape = 'u32[72,128]{1,0:T(1,128)}', space=vmem, size = 0x9000, scoped, tag = 'internal scratch']
  #allocation2 [shape = 'f32[1,1]{1,0:T(1,128)S(6)}', space=smem, size = 0x200, scoped, tag = 'scoped memory for tpu_custom_call.1']
  %s0 = inlined_call_operand.hbm [shape: f32[8,768], index: 0, kind: input, shape index: {}]
  %s1 = inlined_call_operand.hbm [shape: bf16[768,128], index: 1, kind: input, shape index: {}]
  %s2 = inlined_call_operand.vmem [shape: f32[1,128], index: 2, kind: input, shape index: {}]
  %s3 = inlined_call_operand.hbm [shape: f32[8,128], index: 3, kind: input, shape index: {}]
  %s4 = inlined_call_operand.<no memory space> [shape: f32[1,1], index: 4, kind: input, shape index: {}]
  %s5 = inlined_call_operand.hbm [shape: f32[1,1,8], index: 5, kind: output, shape index: {}]
  %s6 = sld [smem:[#allocation0]]
  $region42: #{tpu_custom_call.1} parent=0
    _
  %s8 = ssub.s32 1, %s6
  %s9 = scalar_select 0, %s8, %s6
  %10 = sst [smem:[#allocation2]] %s4
  $region1: #{tpu_custom_call.1} parent=0
    #allocation3 [shape = 'u8[24576]{0}', space=vmem, size = 0x6000, scoped, tag = 'input window, operand 0, single buffered']
    #allocation4 [shape = 's32[1]{0}', space=sflag, size = 0x4, scoped, tag = 'scoped memory for tpu_custom_call.1']
    #allocation5 [shape = 's32[1]{0}', space=sflag, size = 0x4, scoped, tag = 'scoped memory for tpu_custom_call.1']
    #allocation6 [shape = 'u8[196608]{0}', space=vmem, size = 0x30000, scoped, tag = 'input window, operand 1, single buffered']
    #allocation7 [shape = 's32[1]{0}', space=sflag, size = 0x4, scoped, tag = 'scoped memory for tpu_custom_call.1']
    #allocation8 [shape = 'u8[4096]{0}', space=vmem, size = 0x1000, scoped, tag = 'input window, operand 3, single buffered']
    #allocation9 [shape = 'u8[512]{0}', space=vmem, size = 0x400, scoped, tag = 'output window, operand 0, single buffered']
    %11 = vsyncpa [#allocation4], 0
    %12 = vsyncpa [#allocation7], 0
    %13 = vsyncpa [#allocation5], 0
    // Predicated region
    $region2: #{tpu_custom_call.1} parent=1 // pred_check
      _
    $region3: #{tpu_custom_call.1} parent=1 // pred_check_branch
      %15 = sbr.rel (0) target = $region5
    $region4: #{tpu_custom_call.1} parent=1 // pred_region
      %17 = vsyncadd [#allocation4], 0
      %s19 = sshll.u32 %s0, 4
      %s20 = int_to_ptr.hbm [resolvable:$true] %s19
      %s21 = sshll.u32 [#allocation3], 4
      %s22 = int_to_ptr.vmem [resolvable:$true] %s21
      %24 = dma.hbm_to_vmem [thread:$0]  %s20, 768, %s22, [#allocation4]
    $region5: #{tpu_custom_call.1} parent=1 // pred_fallthru
      _
    // Predicated region
    $region6: #{tpu_custom_call.1} parent=1 // pred_check
      _
    $region7: #{tpu_custom_call.1} parent=1 // pred_check_branch
      %26 = sbr.rel (0) target = $region9
    $region8: #{tpu_custom_call.1} parent=1 // pred_region
      %28 = vsyncadd [#allocation7], 0
      %s29 = sshll.u32 %s1, 4
      %s30 = int_to_ptr.hbm [resolvable:$true] %s29
      %s31 = sshll.u32 [#allocation6], 4
      %s32 = int_to_ptr.vmem [resolvable:$true] %s31
      %37 = dma.hbm_to_vmem [thread:$0]  %s30, 6144, %s32, [#allocation7], 64, 64, 4
    $region9: #{tpu_custom_call.1} parent=1 // pred_fallthru
      _
    // Predicated region
    $region10: #{tpu_custom_call.1} parent=1 // pred_check
      _
    $region11: #{tpu_custom_call.1} parent=1 // pred_check_branch
      %39 = sbr.rel (0) target = $region13
    $region12: #{tpu_custom_call.1} parent=1 // pred_region
      _
    $region13: #{tpu_custom_call.1} parent=1 // pred_fallthru
      _
    // Predicated region
    $region14: #{tpu_custom_call.1} parent=1 // pred_check
      _
    $region15: #{tpu_custom_call.1} parent=1 // pred_check_branch
      %41 = sbr.rel (0) target = $region17
    $region16: #{tpu_custom_call.1} parent=1 // pred_region
      %43 = vsyncadd [#allocation7], 0
      %s45 = sshll.u32 %s3, 4
      %s46 = int_to_ptr.hbm [resolvable:$true] %s45
      %s47 = sshll.u32 [#allocation8], 4
      %s48 = int_to_ptr.vmem [resolvable:$true] %s47
      %50 = dma.hbm_to_vmem [thread:$0]  %s46, 128, %s48, [#allocation7]
    $region17: #{tpu_custom_call.1} parent=1 // pred_fallthru
      _
    // Predicated region
    $region18: #{tpu_custom_call.1} parent=1 // pred_check
      _
    $region19: #{tpu_custom_call.1} parent=1 // pred_check_branch
      %52 = sbr.rel (0) target = $region21
    $region20: #{tpu_custom_call.1} parent=1 // pred_region
      _
    $region21: #{tpu_custom_call.1} parent=1 // pred_fallthru
      _
    // Predicated region
    $region22: #{tpu_custom_call.1} parent=1 // pred_check
      _
    $region23: #{tpu_custom_call.1} parent=1 // pred_check_branch
      %54 = sbr.rel (0) target = $region25
    $region24: #{tpu_custom_call.1} parent=1 // pred_region
      %56 = dma.done [#allocation4], 768
    $region25: #{tpu_custom_call.1} parent=1 // pred_fallthru
      _
    // Predicated region
    $region26: #{tpu_custom_call.1} parent=1 // pred_check
      _
    $region27: #{tpu_custom_call.1} parent=1 // pred_check_branch
      %58 = sbr.rel (0) target = $region29
    $region28: #{tpu_custom_call.1} parent=1 // pred_region
      %60 = dma.done [#allocation7], 6144
    $region29: #{tpu_custom_call.1} parent=1 // pred_fallthru
      _
    // Predicated region
    $region30: #{tpu_custom_call.1} parent=1 // pred_check
      _
    $region31: #{tpu_custom_call.1} parent=1 // pred_check_branch
      %62 = sbr.rel (0) target = $region33
    $region32: #{tpu_custom_call.1} parent=1 // pred_region
      %64 = dma.done [#allocation7], 128
    $region33: #{tpu_custom_call.1} parent=1 // pred_fallthru
      _
    %v65 = vld [vmem:[#allocation3] sm:$0xff]
    %v66 = vld [vmem:[#allocation3 + $0x8] sm:$0xff]
    %v67 = vld [vmem:[#allocation3 + $0x10] sm:$0xff]
    %v68 = vld [vmem:[#allocation3 + $0x18] sm:$0xff]
    %v69 = vld [vmem:[#allocation3 + $0x20] sm:$0xff]
    %v70 = vld [vmem:[#allocation3 + $0x28] sm:$0xff]
    %v71 = vpack.c.bf16 %v65, %v65
    %v72 = vpack.c.bf16 %v66, %v66
    %v73 = vpack.c.bf16 %v67, %v67
    %v74 = vpack.c.bf16 %v68, %v68
    %v75 = vpack.c.bf16 %v69, %v69
    %v76 = vpack.c.bf16 %v70, %v70
    %v77 = vld [vmem:[#allocation6] sm:$0xf]
    %v78 = vld [vmem:[#allocation6 + $0x4] sm:$0xf]
    %v79 = vld [vmem:[#allocation6 + $0x8] sm:$0xf]
    %v80 = vld [vmem:[#allocation6 + $0xc] sm:$0xf]
    %v81 = vld [vmem:[#allocation6 + $0x10] sm:$0xf]
    %v82 = vld [vmem:[#allocation6 + $0x14] sm:$0xf]
    %v83 = vld [vmem:[#allocation6 + $0x18] sm:$0xf]
    %v84 = vld [vmem:[#allocation6 + $0x1c] sm:$0xf]
    %v85 = vld [vmem:[#allocation6 + $0x20] sm:$0xf]
    %v86 = vld [vmem:[#allocation6 + $0x24] sm:$0xf]
    %v87 = vld [vmem:[#allocation6 + $0x28] sm:$0xf]
    %v88 = vld [vmem:[#allocation6 + $0x2c] sm:$0xf]
    %v89 = vld [vmem:[#allocation6 + $0x30] sm:$0xf]
    %v90 = vld [vmem:[#allocation6 + $0x34] sm:$0xf]
    %v91 = vld [vmem:[#allocation6 + $0x38] sm:$0xf]
    %v92 = vld [vmem:[#allocation6 + $0x3c] sm:$0xf]
    %v93 = vld [vmem:[#allocation6 + $0x40] sm:$0xf]
    %v94 = vld [vmem:[#allocation6 + $0x44] sm:$0xf]
    %v95 = vld [vmem:[#allocation6 + $0x48] sm:$0xf]
    %v96 = vld [vmem:[#allocation6 + $0x4c] sm:$0xf]
    %v97 = vld [vmem:[#allocation6 + $0x50] sm:$0xf]
    %v98 = vld [vmem:[#allocation6 + $0x54] sm:$0xf]
    %v99 = vld [vmem:[#allocation6 + $0x58] sm:$0xf]
    %v100 = vld [vmem:[#allocation6 + $0x5c] sm:$0xf]
    %v101 = vld [vmem:[#allocation6 + $0x60] sm:$0xf]
    %v102 = vld [vmem:[#allocation6 + $0x64] sm:$0xf]
    %v103 = vld [vmem:[#allocation6 + $0x68] sm:$0xf]
    %v104 = vld [vmem:[#allocation6 + $0x6c] sm:$0xf]
    %v105 = vld [vmem:[#allocation6 + $0x70] sm:$0xf]
    %v106 = vld [vmem:[#allocation6 + $0x74] sm:$0xf]
    %v107 = vld [vmem:[#allocation6 + $0x78] sm:$0xf]
    %v108 = vld [vmem:[#allocation6 + $0x7c] sm:$0xf]
    %v109 = vld [vmem:[#allocation6 + $0x80] sm:$0xf]
    %v110 = vld [vmem:[#allocation6 + $0x84] sm:$0xf]
    %v111 = vld [vmem:[#allocation6 + $0x88] sm:$0xf]
    %v112 = vld [vmem:[#allocation6 + $0x8c] sm:$0xf]
    %v113 = vld [vmem:[#allocation6 + $0x90] sm:$0xf]
    %v114 = vld [vmem:[#allocation6 + $0x94] sm:$0xf]
    %v115 = vld [vmem:[#allocation6 + $0x98] sm:$0xf]
    %v116 = vld [vmem:[#allocation6 + $0x9c] sm:$0xf]
    %v117 = vld [vmem:[#allocation6 + $0xa0] sm:$0xf]
    %v118 = vld [vmem:[#allocation6 + $0xa4] sm:$0xf]
    %v119 = vld [vmem:[#allocation6 + $0xa8] sm:$0xf]
    %v120 = vld [vmem:[#allocation6 + $0xac] sm:$0xf]
    %v121 = vld [vmem:[#allocation6 + $0xb0] sm:$0xf]
    %v122 = vld [vmem:[#allocation6 + $0xb4] sm:$0xf]
    %v123 = vld [vmem:[#allocation6 + $0xb8] sm:$0xf]
    %v124 = vld [vmem:[#allocation6 + $0xbc] sm:$0xf]
    %v125 = vld [vmem:[#allocation6 + $0xc0] sm:$0xf]
    %v126 = vld [vmem:[#allocation6 + $0xc4] sm:$0xf]
    %v127 = vld [vmem:[#allocation6 + $0xc8] sm:$0xf]
    %v128 = vld [vmem:[#allocation6 + $0xcc] sm:$0xf]
    %v129 = vld [vmem:[#allocation6 + $0xd0] sm:$0xf]
    %v130 = vld [vmem:[#allocation6 + $0xd4] sm:$0xf]
    %v131 = vld [vmem:[#allocation6 + $0xd8] sm:$0xf]
    %v132 = vld [vmem:[#allocation6 + $0xdc] sm:$0xf]
    %v133 = vld [vmem:[#allocation6 + $0xe0] sm:$0xf]
    %v134 = vld [vmem:[#allocation6 + $0xe4] sm:$0xf]
    %v135 = vld [vmem:[#allocation6 + $0xe8] sm:$0xf]
    %v136 = vld [vmem:[#allocation6 + $0xec] sm:$0xf]
    %v137 = vld [vmem:[#allocation6 + $0xf0] sm:$0xf]
    %v138 = vld [vmem:[#allocation6 + $0xf4] sm:$0xf]
    %v139 = vld [vmem:[#allocation6 + $0xf8] sm:$0xf]
    %v140 = vld [vmem:[#allocation6 + $0xfc] sm:$0xf]
    %v141 = vld [vmem:[#allocation6 + $0x100] sm:$0xf]
    %v142 = vld [vmem:[#allocation6 + $0x104] sm:$0xf]
    %v143 = vld [vmem:[#allocation6 + $0x108] sm:$0xf]
    %v144 = vld [vmem:[#allocation6 + $0x10c] sm:$0xf]
    %v145 = vld [vmem:[#allocation6 + $0x110] sm:$0xf]
    %v146 = vld [vmem:[#allocation6 + $0x114] sm:$0xf]
    %v147 = vld [vmem:[#allocation6 + $0x118] sm:$0xf]
    %v148 = vld [vmem:[#allocation6 + $0x11c] sm:$0xf]
    %v149 = vld [vmem:[#allocation6 + $0x120] sm:$0xf]
    %v150 = vld [vmem:[#allocation6 + $0x124] sm:$0xf]
    %v151 = vld [vmem:[#allocation6 + $0x128] sm:$0xf]
    %v152 = vld [vmem:[#allocation6 + $0x12c] sm:$0xf]
    %v153 = vld [vmem:[#allocation6 + $0x130] sm:$0xf]
    %v154 = vld [vmem:[#allocation6 + $0x134] sm:$0xf]
    %v155 = vld [vmem:[#allocation6 + $0x138] sm:$0xf]
    %v156 = vld [vmem:[#allocation6 + $0x13c] sm:$0xf]
    %v157 = vld [vmem:[#allocation6 + $0x140] sm:$0xf]
    %v158 = vld [vmem:[#allocation6 + $0x144] sm:$0xf]
    %v159 = vld [vmem:[#allocation6 + $0x148] sm:$0xf]
    %v160 = vld [vmem:[#allocation6 + $0x14c] sm:$0xf]
    %v161 = vld [vmem:[#allocation6 + $0x150] sm:$0xf]
    %v162 = vld [vmem:[#allocation6 + $0x154] sm:$0xf]
    %v163 = vld [vmem:[#allocation6 + $0x158] sm:$0xf]
    %v164 = vld [vmem:[#allocation6 + $0x15c] sm:$0xf]
    %v165 = vld [vmem:[#allocation6 + $0x160] sm:$0xf]
    %v166 = vld [vmem:[#allocation6 + $0x164] sm:$0xf]
    %v167 = vld [vmem:[#allocation6 + $0x168] sm:$0xf]
    %v168 = vld [vmem:[#allocation6 + $0x16c] sm:$0xf]
    %v169 = vld [vmem:[#allocation6 + $0x170] sm:$0xf]
    %v170 = vld [vmem:[#allocation6 + $0x174] sm:$0xf]
    %v171 = vld [vmem:[#allocation6 + $0x178] sm:$0xf]
    %v172 = vld [vmem:[#allocation6 + $0x17c] sm:$0xf]
    %v173 = vld [vmem:[%s2] sm:$0x1]
    %v175 = vperm.slane %v173, 0
    %v273 = vunpack.c.l.b16 %v77
    %v274 = vunpack.c.l.b16 %v78
    %v275 = vunpack.c.l.b16 %v79
    %v276 = vunpack.c.l.b16 %v80
    %v277 = vunpack.c.l.b16 %v81
    %v278 = vunpack.c.l.b16 %v82
    %v279 = vunpack.c.l.b16 %v83
    %v280 = vunpack.c.l.b16 %v84
    %v281 = vunpack.c.l.b16 %v85
    %v282 = vunpack.c.l.b16 %v86
    %v283 = vunpack.c.l.b16 %v87
    %v284 = vunpack.c.l.b16 %v88
    %v285 = vunpack.c.l.b16 %v89
    %v286 = vunpack.c.l.b16 %v90
    %v287 = vunpack.c.l.b16 %v91
    %v288 = vunpack.c.l.b16 %v92
    %v289 = vunpack.c.l.b16 %v93
    %v290 = vunpack.c.l.b16 %v94
    %v291 = vunpack.c.l.b16 %v95
    %v292 = vunpack.c.l.b16 %v96
    %v293 = vunpack.c.l.b16 %v97
    %v294 = vunpack.c.l.b16 %v98
    %v295 = vunpack.c.l.b16 %v99
    %v296 = vunpack.c.l.b16 %v100
    %v297 = vunpack.c.l.b16 %v101
    %v298 = vunpack.c.l.b16 %v102
    %v299 = vunpack.c.l.b16 %v103
    %v300 = vunpack.c.l.b16 %v104
    %v301 = vunpack.c.l.b16 %v105
    %v302 = vunpack.c.l.b16 %v106
    %v303 = vunpack.c.l.b16 %v107
    %v304 = vunpack.c.l.b16 %v108
    %v305 = vunpack.c.l.b16 %v109
    %v306 = vunpack.c.l.b16 %v110
    %v307 = vunpack.c.l.b16 %v111
    %v308 = vunpack.c.l.b16 %v112
    %v309 = vunpack.c.l.b16 %v113
    %v310 = vunpack.c.l.b16 %v114
    %v311 = vunpack.c.l.b16 %v115
    %v312 = vunpack.c.l.b16 %v116
    %v313 = vunpack.c.l.b16 %v117
    %v314 = vunpack.c.l.b16 %v118
    %v315 = vunpack.c.l.b16 %v119
    %v316 = vunpack.c.l.b16 %v120
    %v317 = vunpack.c.l.b16 %v121
    %v318 = vunpack.c.l.b16 %v122
    %v319 = vunpack.c.l.b16 %v123
    %v320 = vunpack.c.l.b16 %v124
    %v321 = vunpack.c.l.b16 %v125
    %v322 = vunpack.c.l.b16 %v126
    %v323 = vunpack.c.l.b16 %v127
    %v324 = vunpack.c.l.b16 %v128
    %v325 = vunpack.c.l.b16 %v129
    %v326 = vunpack.c.l.b16 %v130
    %v327 = vunpack.c.l.b16 %v131
    %v328 = vunpack.c.l.b16 %v132
    %v329 = vunpack.c.l.b16 %v133
    %v330 = vunpack.c.l.b16 %v134
    %v331 = vunpack.c.l.b16 %v135
    %v332 = vunpack.c.l.b16 %v136
    %v333 = vunpack.c.l.b16 %v137
    %v334 = vunpack.c.l.b16 %v138
    %v335 = vunpack.c.l.b16 %v139
    %v336 = vunpack.c.l.b16 %v140
    %v337 = vunpack.c.l.b16 %v141
    %v338 = vunpack.c.l.b16 %v142
    %v339 = vunpack.c.l.b16 %v143
    %v340 = vunpack.c.l.b16 %v144
    %v341 = vunpack.c.l.b16 %v145
    %v342 = vunpack.c.l.b16 %v146
    %v343 = vunpack.c.l.b16 %v147
    %v344 = vunpack.c.l.b16 %v148
    %v345 = vunpack.c.l.b16 %v149
    %v346 = vunpack.c.l.b16 %v150
    %v347 = vunpack.c.l.b16 %v151
    %v348 = vunpack.c.l.b16 %v152
    %v349 = vunpack.c.l.b16 %v153
    %v350 = vunpack.c.l.b16 %v154
    %v351 = vunpack.c.l.b16 %v155
    %v352 = vunpack.c.l.b16 %v156
    %v353 = vunpack.c.l.b16 %v157
    %v354 = vunpack.c.l.b16 %v158
    %v355 = vunpack.c.l.b16 %v159
    %v356 = vunpack.c.l.b16 %v160
    %v357 = vunpack.c.l.b16 %v161
    %v358 = vunpack.c.l.b16 %v162
    %v359 = vunpack.c.l.b16 %v163
    %v360 = vunpack.c.l.b16 %v164
    %v361 = vunpack.c.l.b16 %v165
    %v362 = vunpack.c.l.b16 %v166
    %v363 = vunpack.c.l.b16 %v167
    %v364 = vunpack.c.l.b16 %v168
    %v365 = vunpack.c.l.b16 %v169
    %v366 = vunpack.c.l.b16 %v170
    %v367 = vunpack.c.l.b16 %v171
    %v368 = vunpack.c.l.b16 %v172
    %v369 = vpack.c.b16 %v274, %v273
    %v370 = vpack.c.b16 %v276, %v275
    %v371 = vpack.c.b16 %v278, %v277
    %v372 = vpack.c.b16 %v280, %v279
    %v373 = vpack.c.b16 %v282, %v281
    %v374 = vpack.c.b16 %v284, %v283
    %v375 = vpack.c.b16 %v286, %v285
    %v376 = vpack.c.b16 %v288, %v287
    %v377 = vpack.c.b16 %v290, %v289
    %v378 = vpack.c.b16 %v292, %v291
    %v379 = vpack.c.b16 %v294, %v293
    %v380 = vpack.c.b16 %v296, %v295
    %v381 = vpack.c.b16 %v298, %v297
    %v382 = vpack.c.b16 %v300, %v299
    %v383 = vpack.c.b16 %v302, %v301
    %v384 = vpack.c.b16 %v304, %v303
    %v385 = vpack.c.b16 %v306, %v305
    %v386 = vpack.c.b16 %v308, %v307
    %v387 = vpack.c.b16 %v310, %v309
    %v388 = vpack.c.b16 %v312, %v311
    %v389 = vpack.c.b16 %v314, %v313
    %v390 = vpack.c.b16 %v316, %v315
    %v391 = vpack.c.b16 %v318, %v317
    %v392 = vpack.c.b16 %v320, %v319
    %v393 = vpack.c.b16 %v322, %v321
    %v394 = vpack.c.b16 %v324, %v323
    %v395 = vpack.c.b16 %v326, %v325
    %v396 = vpack.c.b16 %v328, %v327
    %v397 = vpack.c.b16 %v330, %v329
    %v398 = vpack.c.b16 %v332, %v331
    %v399 = vpack.c.b16 %v334, %v333
    %v400 = vpack.c.b16 %v336, %v335
    %v401 = vpack.c.b16 %v338, %v337
    %v402 = vpack.c.b16 %v340, %v339
    %v403 = vpack.c.b16 %v342, %v341
    %v404 = vpack.c.b16 %v344, %v343
    %v405 = vpack.c.b16 %v346, %v345
    %v406 = vpack.c.b16 %v348, %v347
    %v407 = vpack.c.b16 %v350, %v349
    %v408 = vpack.c.b16 %v352, %v351
    %v409 = vpack.c.b16 %v354, %v353
    %v410 = vpack.c.b16 %v356, %v355
    %v411 = vpack.c.b16 %v358, %v357
    %v412 = vpack.c.b16 %v360, %v359
    %v413 = vpack.c.b16 %v362, %v361
    %v414 = vpack.c.b16 %v364, %v363
    %v415 = vpack.c.b16 %v366, %v365
    %v416 = vpack.c.b16 %v368, %v367
    %465 = vmatpush.bf16.msra.mxu0 %v376
    %466 = vmatpush.bf16.msra.mxu0 %v375
    %467 = vmatpush.bf16.msra.mxu0 %v374
    %468 = vmatpush.bf16.msra.mxu0 %v373
    %469 = vmatpush.bf16.msra.mxu0 %v372
    %470 = vmatpush.bf16.msra.mxu0 %v371
    %471 = vmatpush.bf16.msra.mxu0 %v370
    %472 = vmatpush.bf16.msra.mxu0 %v369
    %473 = vmatmul.bf16.gmra.mxu0 %v71
    %v474 = vpop.f32.mrf.mxu0
    %v475 = vadd.f32 %v175, %v474
    %v476 = vpop.f32.mrf.mxu0
    %477 = vdwg.mxu0
    %478 = vmatpush.bf16.msra.mxu0 %v384
    %479 = vmatpush.bf16.msra.mxu0 %v383
    %480 = vmatpush.bf16.msra.mxu0 %v382
    %481 = vmatpush.bf16.msra.mxu0 %v381
    %482 = vmatpush.bf16.msra.mxu0 %v380
    %483 = vmatpush.bf16.msra.mxu0 %v379
    %484 = vmatpush.bf16.msra.mxu0 %v378
    %485 = vmatpush.bf16.msra.mxu0 %v377
    %486 = vmatmul.bf16.gmra.mxu0 %v72
    %v487 = vpop.f32.mrf.mxu0
    %v488 = vadd.f32 %v475, %v487
    %v489 = vpop.f32.mrf.mxu0
    %490 = vdwg.mxu0
    %491 = vmatpush.bf16.msra.mxu0 %v392
    %492 = vmatpush.bf16.msra.mxu0 %v391
    %493 = vmatpush.bf16.msra.mxu0 %v390
    %494 = vmatpush.bf16.msra.mxu0 %v389
    %495 = vmatpush.bf16.msra.mxu0 %v388
    %496 = vmatpush.bf16.msra.mxu0 %v387
    %497 = vmatpush.bf16.msra.mxu0 %v386
    %498 = vmatpush.bf16.msra.mxu0 %v385
    %499 = vmatmul.bf16.gmra.mxu0 %v73
    %v500 = vpop.f32.mrf.mxu0
    %v501 = vadd.f32 %v488, %v500
    %v502 = vpop.f32.mrf.mxu0
    %503 = vdwg.mxu0
    %504 = vmatpush.bf16.msra.mxu0 %v400
    %505 = vmatpush.bf16.msra.mxu0 %v399
    %506 = vmatpush.bf16.msra.mxu0 %v398
    %507 = vmatpush.bf16.msra.mxu0 %v397
    %508 = vmatpush.bf16.msra.mxu0 %v396
    %509 = vmatpush.bf16.msra.mxu0 %v395
    %510 = vmatpush.bf16.msra.mxu0 %v394
    %511 = vmatpush.bf16.msra.mxu0 %v393
    %512 = vmatmul.bf16.gmra.mxu0 %v74
    %v513 = vpop.f32.mrf.mxu0
    %v514 = vadd.f32 %v501, %v513
    %v515 = vpop.f32.mrf.mxu0
    %516 = vdwg.mxu0
    %517 = vmatpush.bf16.msra.mxu0 %v408
    %518 = vmatpush.bf16.msra.mxu0 %v407
    %519 = vmatpush.bf16.msra.mxu0 %v406
    %520 = vmatpush.bf16.msra.mxu0 %v405
    %521 = vmatpush.bf16.msra.mxu0 %v404
    %522 = vmatpush.bf16.msra.mxu0 %v403
    %523 = vmatpush.bf16.msra.mxu0 %v402
    %524 = vmatpush.bf16.msra.mxu0 %v401
    %525 = vmatmul.bf16.gmra.mxu0 %v75
    %v526 = vpop.f32.mrf.mxu0
    %v527 = vadd.f32 %v514, %v526
    %v528 = vpop.f32.mrf.mxu0
    %529 = vdwg.mxu0
    %530 = vmatpush.bf16.msra.mxu0 %v416
    %531 = vmatpush.bf16.msra.mxu0 %v415
    %532 = vmatpush.bf16.msra.mxu0 %v414
    %533 = vmatpush.bf16.msra.mxu0 %v413
    %534 = vmatpush.bf16.msra.mxu0 %v412
    %535 = vmatpush.bf16.msra.mxu0 %v411
    %536 = vmatpush.bf16.msra.mxu0 %v410
    %537 = vmatpush.bf16.msra.mxu0 %v409
    %538 = vmatmul.bf16.gmra.mxu0 %v76
    %v539 = vpop.f32.mrf.mxu0
    %v540 = vadd.f32 %v527, %v539
    %v541 = vpop.f32.mrf.mxu0
    %542 = vdwg.mxu0
    %v543 = vmax.f32 %v540, 0.0
    %v544 = vld [vmem:[#allocation8] sm:$0xff]
    %545 = vmatpush.xpose.msra.mxu0 0.0
    %546 = vmatpush.xpose.msra.mxu0 0.0
    %547 = vmatpush.xpose.msra.mxu0 0.0
    %548 = vmatpush.xpose.msra.mxu0 0.0
    %549 = vmatpush.xpose.msra.mxu0 0.0
    %550 = vmatpush.xpose.msra.mxu0 0.0
    %551 = vmatpush.xpose.msra.mxu0 0.0
    %552 = vmatpush.xpose.msra.mxu0 0.0
    %553 = vmatpush.xpose.msra.mxu0 0.0
    %554 = vmatpush.xpose.msra.mxu0 0.0
    %555 = vmatpush.xpose.msra.mxu0 0.0
    %556 = vmatpush.xpose.msra.mxu0 0.0
    %557 = vmatpush.xpose.msra.mxu0 0.0
    %558 = vmatpush.xpose.msra.mxu0 0.0
    %559 = vmatpush.xpose.msra.mxu0 0.0
    %560 = vmatpush.xpose.msra.mxu0 %v543
    %561 = vmatmul.f32.gmra.mxu0 %v544
    %v562 = vpop.f32.mrf.mxu0
    %v563 = vadd.f32 0.0, %v562
    %564 = vdwg.mxu0
    %s565 = sld [smem:[#allocation2]]
    %v566 = vstv %s565
    %v567 = vadd.f32 %v563, %v566
    %v568 = vmax.f32 %v567, 0.0
    %v569 = vsub.f32 0.0, %v568
    %v570 = vmul.f32 %v569, 1.442695
    %v571 = vpow.pop %v570
    %v572 = vadd.f32 %v571, 1.0
    %v573 = vrcp.pop %v572
    %vm574 = vcmask 57344
    %575 = vst.msk [vmem:[#allocation9] sm:$0x1] %vm574, %v573
    // Predicated region
    $region34: #{tpu_custom_call.1} parent=1 // pred_check
      _
    $region35: #{tpu_custom_call.1} parent=1 // pred_check_branch
      %577 = sbr.rel (0) target = $region37
    $region36: #{tpu_custom_call.1} parent=1 // pred_region
      %579 = vsyncadd [#allocation5], 0
      %s581 = sshll.u32 [#allocation9], 4
      %s582 = int_to_ptr.vmem [resolvable:$true] %s581
      %s583 = sshll.u32 %s5, 4
      %s584 = int_to_ptr.hbm [resolvable:$true] %s583
      %586 = dma.vmem_to_hbm [thread:$0]  %s582, 16, %s584, [#allocation5]
    $region37: #{tpu_custom_call.1} parent=1 // pred_fallthru
      _
    // Predicated region
    $region38: #{tpu_custom_call.1} parent=1 // pred_check
      _
    $region39: #{tpu_custom_call.1} parent=1 // pred_check_branch
      %588 = sbr.rel (0) target = $region41
    $region40: #{tpu_custom_call.1} parent=1 // pred_region
      %590 = dma.done [#allocation5], 16
    $region41: #{tpu_custom_call.1} parent=1 // pred_fallthru
      _
    %591 = vsyncpa [#allocation4], 1
    %592 = vsyncpa [#allocation7], 1
    %593 = vsyncpa [#allocation5], 1

</llo_original>
